<compile_context>
chip_gen: v5e
topology: v5e:2x2
jax: 0.10.0
libtpu: 0.0.40
codegen_flags: <defaults>
</compile_context>

<pallas_src>
import functools

import jax
import jax.numpy as jnp
from jax.experimental import pallas as pl
from jax.experimental.pallas import tpu as pltpu

BN_EPS = 1e-6
LANES = 128
SUBLANES = 8


def _round_up(n, m):
    return ((n + m - 1) // m) * m


def mae_head_kernel(x_ref, w0_ref, w1_ref, b1_ref, o_ref, ssum_ref, ssq_ref,
                    *, n_rows):
    """Grid = (2, num_batch_tiles); axis 0 is the pass, axis 1 the batch tile."""
    p = pl.program_id(0)   # 0 = accumulate BN stats, 1 = normalize + head
    i = pl.program_id(1)   # batch-tile index

    # fc0 on the MXU: bf16 operands, f32 accumulator.  The fc0 bias is
    # intentionally omitted: it is exactly cancelled by the affine=False
    # BatchNorm (mean subtraction) that follows.
    h = jnp.dot(x_ref[...], w0_ref[...], preferred_element_type=jnp.float32)

    @pl.when(jnp.logical_and(p == 0, i == 0))
    def _init_stats():
        ssum_ref[...] = jnp.zeros_like(ssum_ref)
        ssq_ref[...] = jnp.zeros_like(ssq_ref)

    @pl.when(p == 0)
    def _accumulate_stats():
        # One-pass statistics: S = sum(h), Q = sum(h^2) over the batch axis.
        ssum_ref[...] += jnp.sum(h, axis=0, keepdims=True)
        ssq_ref[...] += jnp.sum(h * h, axis=0, keepdims=True)

    @pl.when(jnp.logical_and(p == 1, i == 0))
    def _finalize_stats():
        inv_n = jnp.float32(1.0 / n_rows)
        mean = ssum_ref[...] * inv_n
        var = jnp.maximum(ssq_ref[...] * inv_n - mean * mean, 0.0)
        # Reuse the scratch rows: ssum now holds the mean, ssq the inv-std.
        ssum_ref[...] = mean
        ssq_ref[...] = jax.lax.rsqrt(var + BN_EPS)

    @pl.when(p == 1)
    def _normalize_and_head():
        mean = ssum_ref[...]       # (1, H)
        inv_std = ssq_ref[...]     # (1, H)
        # BN (affine=False) + ReLU, fused with the bf16 downcast for the MXU.
        a = jnp.maximum((h - mean) * inv_std, 0.0).astype(w1_ref.dtype)
        o_ref[...] = (
            jnp.dot(a, w1_ref[...], preferred_element_type=jnp.float32)
            + b1_ref[...]
        ).astype(o_ref.dtype)


def mae_multilayer_head_csi(x, w0, b0, w1, b1, *, batch_tile=256,
                            matmul_dtype=jnp.bfloat16):
    """Forward pass of MAEMultilayerHead_CSI as one Pallas call.

    Args:
      x:  (B, embed_dim) activations.
      w0: (embed_dim, hidden) fc0 weight, already laid out as (in, out).
      b0: (hidden,) fc0 bias. Accepted for interface parity but NOT used: with
          affine=False BatchNorm directly after fc0, a per-feature constant
          bias is exactly removed by the mean subtraction.
      w1: (hidden, num_classes) head weight, (in, out).
      b1: (num_classes,) head bias.
    Returns:
      [logits], logits of shape (B, num_classes) float32 (matches the module's
      `return [outputs]`).
    """
    del b0  # exactly cancelled by the affine=False BatchNorm (see docstring)

    B, E = x.shape
    H = w0.shape[1]
    C = w1.shape[1]

    # Lane-dense output: pad num_classes up to a multiple of 128.
    Cp = _round_up(C, LANES)
    # Batch tiling: tiles are multiples of 8 sublanes; pad B with zero rows.
    bt = min(_round_up(batch_tile, SUBLANES), _round_up(B, SUBLANES))
    Bp = _round_up(B, bt)
    nbt = Bp // bt

    xq = x.astype(matmul_dtype)
    if Bp != B:
        xq = jnp.pad(xq, ((0, Bp - B), (0, 0)))
    w0q = w0.astype(matmul_dtype)
    w1q = jnp.pad(w1, ((0, 0), (0, Cp - C))).astype(matmul_dtype)
    b1q = jnp.pad(b1, (0, Cp - C)).reshape(1, Cp).astype(jnp.float32)

    kernel = functools.partial(mae_head_kernel, n_rows=B)

    grid_spec = pltpu.PrefetchScalarGridSpec(
        num_scalar_prefetch=0,
        grid=(2, nbt),                                    # (pass, batch tile)
        in_specs=[
            pl.BlockSpec((bt, E), lambda p, i: (i, 0)),   # x batch tile
            pl.BlockSpec((E, H), lambda p, i: (0, 0)),    # W0 (DMA'd once)
            pl.BlockSpec((H, Cp), lambda p, i: (0, 0)),   # W1 (DMA'd once)
            pl.BlockSpec((1, Cp), lambda p, i: (0, 0)),   # b1 (DMA'd once)
        ],
        out_specs=pl.BlockSpec((bt, Cp), lambda p, i: (i, 0)),
        scratch_shapes=[
            pltpu.VMEM((1, H), jnp.float32),   # sum(h)    -> mean
            pltpu.VMEM((1, H), jnp.float32),   # sum(h^2)  -> inv-std
        ],
    )

    out_padded = pl.pallas_call(
        kernel,
        out_shape=jax.ShapeDtypeStruct((Bp, Cp), jnp.float32),
        grid_spec=grid_spec,
        compiler_params=pltpu.CompilerParams(
            # Both axes sequential: the stats pass must fully precede the
            # normalize pass, and the per-core scratch accumulator forbids
            # megacore-sharding the batch axis in this single-kernel form.
            dimension_semantics=("arbitrary", "arbitrary"),
        ),
    )(xq, w0q, w1q, b1q)

    return [out_padded[:B, :C]]


def init_params(key, embed_dim, num_classes):
    """Synthetic init mirroring init_weights(): trunc_normal_(std=0.01) for
    weights, zeros for biases."""
    hidden = embed_dim // 2
    k0, k1 = jax.random.split(key)
    std = 0.01
    w0 = (jax.random.truncated_normal(k0, -2.0, 2.0, (embed_dim, hidden),
                                      jnp.float32) * std)
    b0 = jnp.zeros((hidden,), jnp.float32)
    w1 = (jax.random.truncated_normal(k1, -2.0, 2.0, (hidden, num_classes),
                                      jnp.float32) * std)
    b1 = jnp.zeros((num_classes,), jnp.float32)
    return w0, b0, w1, b1


def reference_forward(x, w0, b0, w1, b1):
    """Pure-f32 reference matching the PyTorch module (training-mode BN)."""
    h = x @ w0 + b0
    mean = jnp.mean(h, axis=0, keepdims=True)
    var = jnp.mean((h - mean) ** 2, axis=0, keepdims=True)
    h = (h - mean) / jnp.sqrt(var + BN_EPS)
    h = jnp.maximum(h, 0.0)
    return h @ w1 + b1


def reference_forward_mixed(x, w0, w1, b1, dtype=jnp.bfloat16):
    """Reference mirroring the kernel's mixed precision (bf16 matmul operands,
    f32 accumulation / statistics, fc0 bias dropped)."""
    f32 = jnp.float32
    h = x.astype(dtype).astype(f32) @ w0.astype(dtype).astype(f32)
    n = x.shape[0]
    mean = jnp.sum(h, axis=0, keepdims=True) / n
    var = jnp.maximum(jnp.sum(h * h, axis=0, keepdims=True) / n - mean * mean, 0.0)
    inv_std = jax.lax.rsqrt(var + BN_EPS)
    a = jnp.maximum((h - mean) * inv_std, 0.0).astype(dtype).astype(f32)
    return a @ w1.astype(dtype).astype(f32) + b1.astype(f32)


if __name__ == "__main__":
    key = jax.random.PRNGKey(0)
    kx, kp, kb = jax.random.split(key, 3)

    batch = 8
    embed_dim = 32
    num_classes = 10

    x = jax.random.normal(kx, (batch, embed_dim), jnp.float32)
    w0, b0, w1, b1 = init_params(kp, embed_dim, num_classes)
    # Give fc0 a non-zero bias to exercise the "bias cancelled by BN" path.
    b0 = 0.05 * jax.random.normal(kb, b0.shape, jnp.float32)

    outputs = mae_multilayer_head_csi(x, w0, b0, w1, b1)
    logits = jax.block_until_ready(outputs[0])
    assert logits.shape == (batch, num_classes)
    assert logits.dtype == jnp.float32

    # Tight check against a reference with the kernel's exact mixed precision.
    ref_mixed = reference_forward_mixed(x, w0, w1, b1)
    assert jnp.allclose(logits, ref_mixed, atol=1e-3, rtol=1e-2), \
        "mismatch vs mixed-precision reference"

    # Looser check against the pure-f32 module semantics (bf16 MXU operands).
    ref_f32 = reference_forward(x, w0, b0, w1, b1)
    assert jnp.allclose(logits, ref_f32, atol=5e-3, rtol=5e-2), \
        "mismatch vs f32 reference"

    # Second config: batch not a multiple of the tile -> exercises zero-row
    # padding and multi-tile statistics accumulation (grid = (2, 3)).
    batch2 = 20
    x2 = jax.random.normal(jax.random.PRNGKey(1), (batch2, embed_dim),
                           jnp.float32)
    logits2 = jax.block_until_ready(
        mae_multilayer_head_csi(x2, w0, b0, w1, b1, batch_tile=8)[0])
    assert logits2.shape == (batch2, num_classes)
    ref2 = reference_forward_mixed(x2, w0, w1, b1)
    assert jnp.allclose(logits2, ref2, atol=1e-3, rtol=1e-2), \
        "mismatch vs mixed-precision reference (tiled batch)"

    print("KERNEL_OK")
</pallas_src>

<mosaic_0001>
module attributes {stable_mosaic.version = 11 : i64} {
  func.func @mae_head_kernel(%arg0: i32, %arg1: i32, %arg2: memref<8x32xbf16, #tpu.memory_space<vmem>>, %arg3: memref<32x16xbf16, #tpu.memory_space<vmem>>, %arg4: memref<16x128xbf16, #tpu.memory_space<vmem>>, %arg5: memref<1x128xf32, #tpu.memory_space<vmem>>, %arg6: memref<8x128xf32, #tpu.memory_space<vmem>>, %arg7: memref<1x16xf32, #tpu.memory_space<vmem>>, %arg8: memref<1x16xf32, #tpu.memory_space<vmem>>) attributes {dimension_semantics = [#tpu.dimension_semantics<arbitrary>, #tpu.dimension_semantics<arbitrary>], iteration_bounds = array<i64: 2, 1>, scalar_prefetch = 0 : i64, scratch_operands = 2 : i64, tpu.core_type = #tpu.core_type<tc>, window_params = [{transform_indices = @transform_0, window_bounds = array<i64: 8, 32>}, {pipeline_mode = #tpu.pipeline_mode<synchronous>, transform_indices = @transform_1, window_bounds = array<i64: 32, 16>}, {pipeline_mode = #tpu.pipeline_mode<synchronous>, transform_indices = @transform_2, window_bounds = array<i64: 16, 128>}, {pipeline_mode = #tpu.pipeline_mode<synchronous>, transform_indices = @transform_3, window_bounds = array<i64: 1, 128>}, {transform_indices = @transform_4, window_bounds = array<i64: 8, 128>}]} {
    %c0 = arith.constant 0 : index
    %c0_0 = arith.constant 0 : index
    %0 = vector.load %arg2[%c0, %c0_0] : memref<8x32xbf16, #tpu.memory_space<vmem>>, vector<8x32xbf16>
    %c0_1 = arith.constant 0 : index
    %c0_2 = arith.constant 0 : index
    %1 = vector.load %arg3[%c0_1, %c0_2] : memref<32x16xbf16, #tpu.memory_space<vmem>>, vector<32x16xbf16>
    %cst = arith.constant dense<0.000000e+00> : vector<8x16xf32>
    %2 = tpu.matmul %0, %1, %cst {dimension_numbers = #tpu.dot_dimension_numbers<[1], [0], [0], [1], [0, 0, 1, 1], [], []>} : vector<8x32xbf16>, vector<32x16xbf16>, vector<8x16xf32> -> vector<8x16xf32>
    %c0_i32 = arith.constant 0 : i32
    %3 = arith.cmpi eq, %arg0, %c0_i32 : i32
    %c0_i32_3 = arith.constant 0 : i32
    %4 = arith.cmpi eq, %arg1, %c0_i32_3 : i32
    %5 = arith.andi %3, %4 : i1
    %6 = arith.extui %5 : i1 to i32
    %c0_i32_4 = arith.constant 0 : i32
    %7 = arith.cmpi ne, %6, %c0_i32_4 : i32
    scf.if %7 {
      %cst_11 = arith.constant 0.000000e+00 : f32
      %19 = vector.broadcast %cst_11 : f32 to vector<1x16xf32>
      %c0_12 = arith.constant 0 : index
      %c0_13 = arith.constant 0 : index
      %20 = vector.load %arg7[%c0_12, %c0_13] : memref<1x16xf32, #tpu.memory_space<vmem>>, vector<1x16xf32>
      tpu.vector_store %arg7[%c0_12, %c0_13], %19 {strides = array<i32>} : memref<1x16xf32, #tpu.memory_space<vmem>>, vector<1x16xf32>,
      %cst_14 = arith.constant 0.000000e+00 : f32
      %21 = vector.broadcast %cst_14 : f32 to vector<1x16xf32>
      %c0_15 = arith.constant 0 : index
      %c0_16 = arith.constant 0 : index
      %22 = vector.load %arg8[%c0_15, %c0_16] : memref<1x16xf32, #tpu.memory_space<vmem>>, vector<1x16xf32>
      tpu.vector_store %arg8[%c0_15, %c0_16], %21 {strides = array<i32>} : memref<1x16xf32, #tpu.memory_space<vmem>>, vector<1x16xf32>,
    } else {
    }
    %c0_i32_5 = arith.constant 0 : i32
    %8 = arith.cmpi eq, %arg0, %c0_i32_5 : i32
    %9 = arith.extui %8 : i1 to i32
    %c0_i32_6 = arith.constant 0 : i32
    %10 = arith.cmpi ne, %9, %c0_i32_6 : i32
    scf.if %10 {
      %c0_11 = arith.constant 0 : index
      %c0_12 = arith.constant 0 : index
      %19 = vector.load %arg7[%c0_11, %c0_12] : memref<1x16xf32, #tpu.memory_space<vmem>>, vector<1x16xf32>
      %cst_13 = arith.constant dense<0.000000e+00> : vector<16xf32>
      %20 = vector.multi_reduction <add>, %2, %cst_13 [0] : vector<8x16xf32> to vector<16xf32>
      %21 = vector.shape_cast %20 : vector<16xf32> to vector<1x16xf32>
      %22 = arith.addf %19, %21 : vector<1x16xf32>
      %c0_14 = arith.constant 0 : index
      %c0_15 = arith.constant 0 : index
      %23 = vector.load %arg7[%c0_14, %c0_15] : memref<1x16xf32, #tpu.memory_space<vmem>>, vector<1x16xf32>
      tpu.vector_store %arg7[%c0_14, %c0_15], %22 {strides = array<i32>} : memref<1x16xf32, #tpu.memory_space<vmem>>, vector<1x16xf32>,
      %c0_16 = arith.constant 0 : index
      %c0_17 = arith.constant 0 : index
      %24 = vector.load %arg8[%c0_16, %c0_17] : memref<1x16xf32, #tpu.memory_space<vmem>>, vector<1x16xf32>
      %25 = arith.mulf %2, %2 : vector<8x16xf32>
      %cst_18 = arith.constant dense<0.000000e+00> : vector<16xf32>
      %26 = vector.multi_reduction <add>, %25, %cst_18 [0] : vector<8x16xf32> to vector<16xf32>
      %27 = vector.shape_cast %26 : vector<16xf32> to vector<1x16xf32>
      %28 = arith.addf %24, %27 : vector<1x16xf32>
      %c0_19 = arith.constant 0 : index
      %c0_20 = arith.constant 0 : index
      %29 = vector.load %arg8[%c0_19, %c0_20] : memref<1x16xf32, #tpu.memory_space<vmem>>, vector<1x16xf32>
      tpu.vector_store %arg8[%c0_19, %c0_20], %28 {strides = array<i32>} : memref<1x16xf32, #tpu.memory_space<vmem>>, vector<1x16xf32>,
    } else {
    }
    %c1_i32 = arith.constant 1 : i32
    %11 = arith.cmpi eq, %arg0, %c1_i32 : i32
    %c0_i32_7 = arith.constant 0 : i32
    %12 = arith.cmpi eq, %arg1, %c0_i32_7 : i32
    %13 = arith.andi %11, %12 : i1
    %14 = arith.extui %13 : i1 to i32
    %c0_i32_8 = arith.constant 0 : i32
    %15 = arith.cmpi ne, %14, %c0_i32_8 : i32
    scf.if %15 {
      %c0_11 = arith.constant 0 : index
      %c0_12 = arith.constant 0 : index
      %19 = vector.load %arg7[%c0_11, %c0_12] : memref<1x16xf32, #tpu.memory_space<vmem>>, vector<1x16xf32>
      %cst_13 = arith.constant 1.250000e-01 : f32
      %20 = vector.broadcast %cst_13 : f32 to vector<1x16xf32>
      %21 = arith.mulf %19, %20 : vector<1x16xf32>
      %c0_14 = arith.constant 0 : index
      %c0_15 = arith.constant 0 : index
      %22 = vector.load %arg8[%c0_14, %c0_15] : memref<1x16xf32, #tpu.memory_space<vmem>>, vector<1x16xf32>
      %cst_16 = arith.constant 1.250000e-01 : f32
      %23 = vector.broadcast %cst_16 : f32 to vector<1x16xf32>
      %24 = arith.mulf %22, %23 : vector<1x16xf32>
      %25 = arith.mulf %21, %21 : vector<1x16xf32>
      %26 = arith.subf %24, %25 : vector<1x16xf32>
      %cst_17 = arith.constant 0.000000e+00 : f32
      %27 = vector.broadcast %cst_17 : f32 to vector<1x16xf32>
      %28 = arith.maximumf %26, %27 : vector<1x16xf32>
      %c0_18 = arith.constant 0 : index
      %c0_19 = arith.constant 0 : index
      %29 = vector.load %arg7[%c0_18, %c0_19] : memref<1x16xf32, #tpu.memory_space<vmem>>, vector<1x16xf32>
      tpu.vector_store %arg7[%c0_18, %c0_19], %21 {strides = array<i32>} : memref<1x16xf32, #tpu.memory_space<vmem>>, vector<1x16xf32>,
      %cst_20 = arith.constant 9.99999997E-7 : f32
      %30 = vector.broadcast %cst_20 : f32 to vector<1x16xf32>
      %31 = arith.addf %28, %30 : vector<1x16xf32>
      %32 = math.rsqrt %31 : vector<1x16xf32>
      %c0_21 = arith.constant 0 : index
      %c0_22 = arith.constant 0 : index
      %33 = vector.load %arg8[%c0_21, %c0_22] : memref<1x16xf32, #tpu.memory_space<vmem>>, vector<1x16xf32>
      tpu.vector_store %arg8[%c0_21, %c0_22], %32 {strides = array<i32>} : memref<1x16xf32, #tpu.memory_space<vmem>>, vector<1x16xf32>,
    } else {
    }
    %c1_i32_9 = arith.constant 1 : i32
    %16 = arith.cmpi eq, %arg0, %c1_i32_9 : i32
    %17 = arith.extui %16 : i1 to i32
    %c0_i32_10 = arith.constant 0 : i32
    %18 = arith.cmpi ne, %17, %c0_i32_10 : i32
    scf.if %18 {
      %c0_11 = arith.constant 0 : index
      %c0_12 = arith.constant 0 : index
      %19 = vector.load %arg7[%c0_11, %c0_12] : memref<1x16xf32, #tpu.memory_space<vmem>>, vector<1x16xf32>
      %c0_13 = arith.constant 0 : index
      %c0_14 = arith.constant 0 : index
      %20 = vector.load %arg8[%c0_13, %c0_14] : memref<1x16xf32, #tpu.memory_space<vmem>>, vector<1x16xf32>
      %21 = vector.broadcast %19 : vector<1x16xf32> to vector<8x16xf32>
      %22 = arith.subf %2, %21 : vector<8x16xf32>
      %23 = vector.broadcast %20 : vector<1x16xf32> to vector<8x16xf32>
      %24 = arith.mulf %22, %23 : vector<8x16xf32>
      %cst_15 = arith.constant 0.000000e+00 : f32
      %25 = vector.broadcast %cst_15 : f32 to vector<8x16xf32>
      %26 = arith.maximumf %24, %25 : vector<8x16xf32>
      %27 = arith.truncf %26 : vector<8x16xf32> to vector<8x16xbf16>
      %c0_16 = arith.constant 0 : index
      %c0_17 = arith.constant 0 : index
      %28 = vector.load %arg4[%c0_16, %c0_17] : memref<16x128xbf16, #tpu.memory_space<vmem>>, vector<16x128xbf16>
      %cst_18 = arith.constant dense<0.000000e+00> : vector<8x128xf32>
      %29 = tpu.matmul %27, %28, %cst_18 {dimension_numbers = #tpu.dot_dimension_numbers<[1], [0], [0], [1], [0, 0, 1, 1], [], []>} : vector<8x16xbf16>, vector<16x128xbf16>, vector<8x128xf32> -> vector<8x128xf32>
      %c0_19 = arith.constant 0 : index
      %c0_20 = arith.constant 0 : index
      %30 = vector.load %arg5[%c0_19, %c0_20] : memref<1x128xf32, #tpu.memory_space<vmem>>, vector<1x128xf32>
      %31 = vector.broadcast %30 : vector<1x128xf32> to vector<8x128xf32>
      %32 = arith.addf %29, %31 : vector<8x128xf32>
      %c0_21 = arith.constant 0 : index
      %c0_22 = arith.constant 0 : index
      %33 = vector.load %arg6[%c0_21, %c0_22] : memref<8x128xf32, #tpu.memory_space<vmem>>, vector<8x128xf32>
      tpu.vector_store %arg6[%c0_21, %c0_22], %32 {strides = array<i32>} : memref<8x128xf32, #tpu.memory_space<vmem>>, vector<8x128xf32>,
    } else {
    }
    return
  }
  func.func @transform_0(%arg0: i32, %arg1: i32) -> (i32, i32) {
    %c0_i32 = arith.constant 0 : i32
    %c0_i32_0 = arith.constant 0 : i32
    return %arg1, %c0_i32 : i32, i32
  }
  func.func @transform_1(%arg0: i32, %arg1: i32) -> (i32, i32) {
    %c0_i32 = arith.constant 0 : i32
    %c0_i32_0 = arith.constant 0 : i32
    %c0_i32_1 = arith.constant 0 : i32
    return %c0_i32, %c0_i32_0 : i32, i32
  }
  func.func @transform_2(%arg0: i32, %arg1: i32) -> (i32, i32) {
    %c0_i32 = arith.constant 0 : i32
    %c0_i32_0 = arith.constant 0 : i32
    %c0_i32_1 = arith.constant 0 : i32
    return %c0_i32, %c0_i32_0 : i32, i32
  }
  func.func @transform_3(%arg0: i32, %arg1: i32) -> (i32, i32) {
    %c0_i32 = arith.constant 0 : i32
    %c0_i32_0 = arith.constant 0 : i32
    %c0_i32_1 = arith.constant 0 : i32
    return %c0_i32, %c0_i32_0 : i32, i32
  }
  func.func @transform_4(%arg0: i32, %arg1: i32) -> (i32, i32) {
    %c0_i32 = arith.constant 0 : i32
    %c0_i32_0 = arith.constant 0 : i32
    return %arg1, %c0_i32 : i32, i32
  }
}

</mosaic_0001>

<llo_original>
// kernel: tpu_custom_call.1
$region0: #{tpu_custom_call.1}
  #allocation0 [shape = 'u32[]', space=smem, size = 0x4, offset = 0x4, fixed_abs, tag = 'smem constant byte address 0x4 - core index']
  #allocation1 [shape = 'u32[72,128]{1,0:T(1,128)}', space=vmem, size = 0x9000, scoped, tag = 'internal scratch']
  #allocation2 [shape = 'f32[1,16]{1,0:T(1,128)}', space=vmem, size = 0x200, scoped, tag = 'scratch operand']
  #allocation3 [shape = 'f32[1,16]{1,0:T(1,128)}', space=vmem, size = 0x200, scoped, tag = 'scratch operand']
  %s0 = inlined_call_operand.vmem [shape: bf16[8,32], index: 0, kind: input, shape index: {}]
  %s1 = inlined_call_operand.vmem [shape: bf16[32,16], index: 1, kind: input, shape index: {}]
  %s2 = inlined_call_operand.vmem [shape: bf16[16,128], index: 2, kind: input, shape index: {}]
  %s3 = inlined_call_operand.vmem [shape: f32[1,128], index: 3, kind: input, shape index: {}]
  %s4 = inlined_call_operand.hbm [shape: f32[8,128], index: 4, kind: output, shape index: {}]
  %s5 = sld [smem:[#allocation0]]
  $region65: #{tpu_custom_call.1} parent=0
    _
  %s7 = ssub.s32 1, %s5
  %s8 = scalar_select 0, %s7, %s5
  $region1: #{tpu_custom_call.1} parent=0
    #allocation4 [shape = 'u8[4096]{0}', space=vmem, size = 0x1000, scoped, tag = 'output window, operand 0, single buffered']
    #allocation5 [shape = 's32[2]{0}', space=sflag, size = 0x8, scoped, tag = 'scoped memory for tpu_custom_call.1']
    %9 = vsyncpa [#allocation5], 0
    loop: start=0, step=1, limit=4
    $region2: #{tpu_custom_call.1} parent=1 // loop_pre_header
      _
    $region3: #{tpu_custom_call.1} parent=1 // loop_header
      %s11 = sphi 0, %s15
      %p12 = scmp.ge.s32.totalorder %s11, 4
      %s18 = sphi 0, %s30
      %s19 = sphi 0, %s26
      %s20 = sphi 0, %s18
      %s21 = sphi 0, %s19
      %s22 = sphi 0, %s20
      %s23 = sphi 0, %s21
      %s33 = sphi 0, %s35
      %s36 = sphi 0, %s33
      %s37 = sphi 0, %s36
      %s53 = sphi 0, %s37
      %s57 = sphi 0, %s57
      %s59 = sphi 0, %s57
      %s60 = sphi 0, %s59
      %s74 = sphi 0, %s60
      %s78 = sphi 0, %s78
      %s80 = sphi 0, %s78
      %s81 = sphi 0, %s80
      %s95 = sphi 0, %s81
      %s99 = sphi 0, %s99
      %s101 = sphi 0, %s99
      %s102 = sphi 0, %s101
      %s116 = sphi 0, %s102
      %s122 = sphi 0, %s124
      %s125 = sphi 0, %s122
      %s126 = sphi 0, %s125
      %s142 = sphi 0, %s126
    $region4: #{tpu_custom_call.1} parent=1 // loop_header_branch
      %14 = sbr.rel (%p12) target = $region8
    $region5: #{tpu_custom_call.1} parent=1 // loop_body
      %s16 = ssub.s32 %s11, 1
      %s17 = ssub.s32 %s11, 2
      %s24 = sadd.s32 1, %s19
      %p25 = scmp.ge.s32.totalorder %s24, 1
      %s26 = scalar_select %p25, 0, %s24
      %s27 = sadd.s32 1, %s18
      %s28 = scalar_select %p25, %s27, %s18
      %p29 = scmp.ge.s32.totalorder %s28, 2
      %s30 = scalar_select %p29, 0, %s28
      %s31 = ssub.s32 %s19, %s26
      %p32 = scmp.eq.s32.totalorder %s31, 0
      %s34 = sadd.s32 %s33, 1
      %s35 = scalar_select %p32, %s33, %s34
      %p38 = pneg %p32
      %p39 = scmp.eq.s32.totalorder %s11, 1
      %p40 = por %p38, %p39
      %p41 = scmp.ne.s32.totalorder %s33, %s36
      %p42 = scmp.eq.s32.totalorder %s11, 0
      %p43 = por %p41, %p42
      %p44 = scmp.ne.s32.totalorder %s33, %s36
      %p45 = scmp.eq.s32.totalorder %s16, 1
      %p46 = por %p44, %p45
      %p47 = scmp.ne.s32.totalorder %s36, %s37
      %p48 = scmp.eq.s32.totalorder %s16, 0
      %p49 = por %p47, %p48
      %p50 = scmp.ne.s32.totalorder %s36, %s37
      %p51 = scmp.eq.s32.totalorder %s17, 1
      %p52 = por %p50, %p51
      %p54 = scmp.ne.s32.totalorder %s37, %s53
      %p55 = scmp.eq.s32.totalorder %s17, 0
      %p56 = por %p54, %p55
      %s58 = sadd.s32 %s57, 1
      %p61 = scmp.eq.s32.totalorder %s11, 1
      %p62 = scmp.ne.s32.totalorder %s57, %s59
      %p63 = scmp.eq.s32.totalorder %s11, 0
      %p64 = por %p62, %p63
      %p65 = scmp.ne.s32.totalorder %s57, %s59
      %p66 = scmp.eq.s32.totalorder %s16, 1
      %p67 = por %p65, %p66
      %p68 = scmp.ne.s32.totalorder %s59, %s60
      %p69 = scmp.eq.s32.totalorder %s16, 0
      %p70 = por %p68, %p69
      %p71 = scmp.ne.s32.totalorder %s59, %s60
      %p72 = scmp.eq.s32.totalorder %s17, 1
      %p73 = por %p71, %p72
      %p75 = scmp.ne.s32.totalorder %s60, %s74
      %p76 = scmp.eq.s32.totalorder %s17, 0
      %p77 = por %p75, %p76
      %s79 = sadd.s32 %s78, 1
      %p82 = scmp.eq.s32.totalorder %s11, 1
      %p83 = scmp.ne.s32.totalorder %s78, %s80
      %p84 = scmp.eq.s32.totalorder %s11, 0
      %p85 = por %p83, %p84
      %p86 = scmp.ne.s32.totalorder %s78, %s80
      %p87 = scmp.eq.s32.totalorder %s16, 1
      %p88 = por %p86, %p87
      %p89 = scmp.ne.s32.totalorder %s80, %s81
      %p90 = scmp.eq.s32.totalorder %s16, 0
      %p91 = por %p89, %p90
      %p92 = scmp.ne.s32.totalorder %s80, %s81
      %p93 = scmp.eq.s32.totalorder %s17, 1
      %p94 = por %p92, %p93
      %p96 = scmp.ne.s32.totalorder %s81, %s95
      %p97 = scmp.eq.s32.totalorder %s17, 0
      %p98 = por %p96, %p97
      %s100 = sadd.s32 %s99, 1
      %p103 = scmp.eq.s32.totalorder %s11, 1
      %p104 = scmp.ne.s32.totalorder %s99, %s101
      %p105 = scmp.eq.s32.totalorder %s11, 0
      %p106 = por %p104, %p105
      %p107 = scmp.ne.s32.totalorder %s99, %s101
      %p108 = scmp.eq.s32.totalorder %s16, 1
      %p109 = por %p107, %p108
      %p110 = scmp.ne.s32.totalorder %s101, %s102
      %p111 = scmp.eq.s32.totalorder %s16, 0
      %p112 = por %p110, %p111
      %p113 = scmp.ne.s32.totalorder %s101, %s102
      %p114 = scmp.eq.s32.totalorder %s17, 1
      %p115 = por %p113, %p114
      %p117 = scmp.ne.s32.totalorder %s102, %s116
      %p118 = scmp.eq.s32.totalorder %s17, 0
      %p119 = por %p117, %p118
      %s120 = ssub.s32 %s19, %s26
      %p121 = scmp.eq.s32.totalorder %s120, 0
      %s123 = sadd.s32 %s122, 1
      %s124 = scalar_select %p121, %s122, %s123
      %p127 = pneg %p121
      %p128 = scmp.eq.s32.totalorder %s11, 1
      %p129 = por %p127, %p128
      %p130 = scmp.ne.s32.totalorder %s122, %s125
      %p131 = scmp.eq.s32.totalorder %s11, 0
      %p132 = por %p130, %p131
      %p133 = scmp.ne.s32.totalorder %s122, %s125
      %p134 = scmp.eq.s32.totalorder %s16, 1
      %p135 = por %p133, %p134
      %p136 = scmp.ne.s32.totalorder %s125, %s126
      %p137 = scmp.eq.s32.totalorder %s16, 0
      %p138 = por %p136, %p137
      %p139 = scmp.ne.s32.totalorder %s125, %s126
      %p140 = scmp.eq.s32.totalorder %s17, 1
      %p141 = por %p139, %p140
      %p143 = scmp.ne.s32.totalorder %s126, %s142
      %p144 = scmp.eq.s32.totalorder %s17, 0
      %p145 = por %p143, %p144
      %p146 = scmp.le.s32.totalorder 1, %s11
      %p147 = scmp.lt.s32.totalorder %s11, 3
      %p148 = pnand %p146, %p147
      %p149 = pneg %p148
      // Predicated region
      $region9: #{tpu_custom_call.1} parent=5 // pred_check
        _
      $region10: #{tpu_custom_call.1} parent=5 // pred_check_branch
        %151 = sbr.rel (%p148) target = $region12
      $region11: #{tpu_custom_call.1} parent=5 // pred_region
        %s152 = ssub.s32 %s11, 1
        // Predicated region
        $region13: #{tpu_custom_call.1} parent=11 // pred_check
          %p153 = pneg %p49
        $region14: #{tpu_custom_call.1} parent=11 // pred_check_branch
          %155 = sbr.rel (%p153) target = $region16
        $region15: #{tpu_custom_call.1} parent=11 // pred_region
          %p156 = scmp.lt.s32.totalorder %s21, 0
          %s157 = scalar_select %p156, %s21, 0
          %s158 = smul.addr %s157, 4
          %s159 = scalar_lea.vmem %s0, %s158
        $region16: #{tpu_custom_call.1} parent=11 // pred_fallthru
          _
        // Predicated region
        $region17: #{tpu_custom_call.1} parent=11 // pred_check
          %p160 = pneg %p70
        $region18: #{tpu_custom_call.1} parent=11 // pred_check_branch
          %162 = sbr.rel (%p160) target = $region20
        $region19: #{tpu_custom_call.1} parent=11 // pred_region
          _
        $region20: #{tpu_custom_call.1} parent=11 // pred_fallthru
          _
        // Predicated region
        $region21: #{tpu_custom_call.1} parent=11 // pred_check
          %p163 = pneg %p91
        $region22: #{tpu_custom_call.1} parent=11 // pred_check_branch
          %165 = sbr.rel (%p163) target = $region24
        $region23: #{tpu_custom_call.1} parent=11 // pred_region
          _
        $region24: #{tpu_custom_call.1} parent=11 // pred_fallthru
          _
        // Predicated region
        $region25: #{tpu_custom_call.1} parent=11 // pred_check
          %p166 = pneg %p112
        $region26: #{tpu_custom_call.1} parent=11 // pred_check_branch
          %168 = sbr.rel (%p166) target = $region28
        $region27: #{tpu_custom_call.1} parent=11 // pred_region
          _
        $region28: #{tpu_custom_call.1} parent=11 // pred_fallthru
          _
      $region12: #{tpu_custom_call.1} parent=5 // pred_fallthru
        _
      %p169 = scmp.lt.s32.totalorder %s11, 2
      // Predicated region
      $region29: #{tpu_custom_call.1} parent=5 // pred_check
        %p170 = pneg %p169
      $region30: #{tpu_custom_call.1} parent=5 // pred_check_branch
        %172 = sbr.rel (%p170) target = $region32
      $region31: #{tpu_custom_call.1} parent=5 // pred_region
        _
      $region32: #{tpu_custom_call.1} parent=5 // pred_fallthru
        _
      %p173 = scmp.le.s32.totalorder 1, %s11
      %p174 = scmp.lt.s32.totalorder %s11, 3
      %p175 = pnand %p173, %p174
      %p176 = pneg %p175
      // Predicated region
      $region33: #{tpu_custom_call.1} parent=5 // pred_check
        _
      $region34: #{tpu_custom_call.1} parent=5 // pred_check_branch
        %178 = sbr.rel (%p175) target = $region36
      $region35: #{tpu_custom_call.1} parent=5 // pred_region
        %s179 = ssub.s32 %s11, 1
        %p180 = scmp.lt.s32.totalorder %s21, 0
        %s181 = scalar_select %p180, %s21, 0
        %s182 = smul.addr %s181, 4
        %s183 = scalar_lea.vmem %s0, %s182
        %p184 = pneg %p49
        %p185 = pneg %p46
        %p186 = pneg %p70
        %p187 = pneg %p67
        %p188 = pneg %p91
        %p189 = pneg %p88
        %p190 = pneg %p112
        %p191 = pneg %p109
        %p192 = pneg %p138
        %p193 = pneg %p135
        %p194 = scmp.lt.s32.totalorder %s21, 0
        %s195 = scalar_select %p194, %s21, 0
        %s196 = smul.addr %s195, 4
        %s197 = scalar_lea.vmem %s0, %s196
        %v199 = vld [vmem:[%s197] sm:$0xf]
        %v200 = vld [vmem:[%s1] sm:$0xf]
        %v201 = vld [vmem:[%s1 + $0x4] sm:$0xf]
        %v202 = vld [vmem:[%s1 + $0x8] sm:$0xf]
        %v203 = vld [vmem:[%s1 + $0xc] sm:$0xf]
        %v208 = vunpack.c.l.b16 %v200
        %v209 = vunpack.c.l.b16 %v201
        %v210 = vunpack.c.l.b16 %v202
        %v211 = vunpack.c.l.b16 %v203
        %v212 = vpack.c.b16 %v209, %v208
        %v213 = vpack.c.b16 %v211, %v210
        %vm216 = vcmask 261120
        %v218 = vsel %vm216, %v199, 0
        %220 = vmatpush.bf16.msra.mxu0 0
        %221 = vmatpush.bf16.msra.mxu0 0
        %222 = vmatpush.bf16.msra.mxu0 0
        %223 = vmatpush.bf16.msra.mxu0 0
        %224 = vmatpush.bf16.msra.mxu0 0
        %225 = vmatpush.bf16.msra.mxu0 0
        %226 = vmatpush.bf16.msra.mxu0 %v213
        %227 = vmatpush.bf16.msra.mxu0 %v212
        %228 = vmatmul.bf16.gmra.mxu0 %v218
        %v229 = vpop.f32.mrf.mxu0
        %v230 = vadd.f32 0.0, %v229
        %v231 = vpop.f32.mrf.mxu0
        %232 = vdwg.mxu0
        %p233 = scmp.eq.s32.totalorder %s20, 0
        %p234 = scmp.eq.s32.totalorder %s21, 0
        %p235 = pnand %p233, %p234
        %p236 = pneg %p235
        // Predicated region
        $region37: #{tpu_custom_call.1} parent=35 // pred_check
          _
        $region38: #{tpu_custom_call.1} parent=35 // pred_check_branch
          %238 = sbr.rel (%p235) target = $region40
        $region39: #{tpu_custom_call.1} parent=35 // pred_region
          %vm239 = vcmask 122880
          %240 = vst.msk [vmem:[#allocation2] sm:$0x1] %vm239, 0.0
          %241 = vst.msk [vmem:[#allocation3] sm:$0x1] %vm239, 0.0
        $region40: #{tpu_custom_call.1} parent=35 // pred_fallthru
          _
        // Predicated region
        $region41: #{tpu_custom_call.1} parent=35 // pred_check
          %p242 = pneg %p233
        $region42: #{tpu_custom_call.1} parent=35 // pred_check_branch
          %244 = sbr.rel (%p242) target = $region44
        $region43: #{tpu_custom_call.1} parent=35 // pred_region
          %v245 = vld [vmem:[#allocation2] sm:$0x1]
          %vm246 = vcmask 130048
          %v247 = vsel %vm246, %v230, 0.0
          %v248 = vrot.slane %v247, 4
          %v249 = vadd.f32 %v247, %v248
          %v250 = vrot.slane %v249, 2
          %v251 = vadd.f32 %v249, %v250
          %v252 = vrot.slane %v251, 1
          %v253 = vadd.f32 %v251, %v252
          %v254 = vadd.f32 %v245, %v253
          %vm255 = vcmask 122880
          %256 = vst.msk [vmem:[#allocation2] sm:$0x1] %vm255, %v254
          %v257 = vld [vmem:[#allocation3] sm:$0x1]
          %v258 = vmul.f32 %v230, %v230
          %v259 = vsel %vm246, %v258, 0.0
          %v260 = vrot.slane %v259, 4
          %v261 = vadd.f32 %v259, %v260
          %v262 = vrot.slane %v261, 2
          %v263 = vadd.f32 %v261, %v262
          %v264 = vrot.slane %v263, 1
          %v265 = vadd.f32 %v263, %v264
          %v266 = vadd.f32 %v257, %v265
          %267 = vst.msk [vmem:[#allocation3] sm:$0x1] %vm255, %v266
        $region44: #{tpu_custom_call.1} parent=35 // pred_fallthru
          _
        %p268 = scmp.eq.s32.totalorder %s20, 1
        %p269 = pnand %p268, %p234
        %p270 = pneg %p269
        // Predicated region
        $region45: #{tpu_custom_call.1} parent=35 // pred_check
          _
        $region46: #{tpu_custom_call.1} parent=35 // pred_check_branch
          %272 = sbr.rel (%p269) target = $region48
        $region47: #{tpu_custom_call.1} parent=35 // pred_region
          %v273 = vld [vmem:[#allocation2] sm:$0x1]
          %v274 = vmul.f32 %v273, 0.125
          %v275 = vld [vmem:[#allocation3] sm:$0x1]
          %v276 = vmul.f32 %v275, 0.125
          %v277 = vmul.f32 %v274, %v274
          %v278 = vsub.f32 %v276, %v277
          %v279 = vmax.f32 %v278, 0.0
          %vm280 = vcmask 122880
          %281 = vst.msk [vmem:[#allocation2] sm:$0x1] %vm280, %v274
          %v282 = vadd.f32 %v279, 1e-06
          %v283 = vrsqrt.pop %v282
          %v284 = vmul.f32 %v283, %v282
          %v285 = vmul.f32 %v284, %v283
          %v286 = vmul.f32 0.5, %v285
          %v287 = vsub.f32 1.5, %v286
          %v288 = vmul.f32 %v283, %v287
          %vm289 = vweird.f32 %v282
          %vm290 = vweird.f32 %v283
          %vm291 = vmor %vm289, %vm290
          %v292 = vsel %vm291, %v283, %v288
          %293 = vst.msk [vmem:[#allocation3] sm:$0x1] %vm280, %v292
        $region48: #{tpu_custom_call.1} parent=35 // pred_fallthru
          _
        // Predicated region
        $region49: #{tpu_custom_call.1} parent=35 // pred_check
          %p294 = pneg %p268
        $region50: #{tpu_custom_call.1} parent=35 // pred_check_branch
          %296 = sbr.rel (%p294) target = $region52
        $region51: #{tpu_custom_call.1} parent=35 // pred_region
          %v297 = vld [vmem:[#allocation2] sm:$0x1]
          %v298 = vld [vmem:[#allocation3] sm:$0x1]
          %v300 = vperm.slane %v297, 0
          %v302 = vsub.f32 %v230, %v300
          %v304 = vperm.slane %v298, 0
          %v306 = vmul.f32 %v302, %v304
          %v307 = vmax.f32 %v306, 0.0
          %v308 = vpack.c.bf16 %v307, %v307
          %v309 = vld [vmem:[%s2] sm:$0xf]
          %v310 = vld [vmem:[%s2 + $0x4] sm:$0xf]
          %v311 = vld [vmem:[%s3] sm:$0x1]
          %v313 = vperm.slane %v311, 0
          %v317 = vunpack.c.l.b16 %v309
          %v318 = vunpack.c.l.b16 %v310
          %v319 = vpack.c.b16 %v318, %v317
          %vm321 = vcmask 130048
          %v323 = vsel %vm321, %v308, 0
          %325 = vmatpush.bf16.msra.mxu0 0
          %326 = vmatpush.bf16.msra.mxu0 0
          %327 = vmatpush.bf16.msra.mxu0 0
          %328 = vmatpush.bf16.msra.mxu0 0
          %329 = vmatpush.bf16.msra.mxu0 0
          %330 = vmatpush.bf16.msra.mxu0 0
          %331 = vmatpush.bf16.msra.mxu0 0
          %332 = vmatpush.bf16.msra.mxu0 %v319
          %333 = vmatmul.bf16.gmra.mxu0 %v323
          %v334 = vpop.f32.mrf.mxu0
          %v335 = vadd.f32 %v313, %v334
          %v336 = vpop.f32.mrf.mxu0
          %337 = vdwg.mxu0
          %338 = vst [vmem:[#allocation4] sm:$0xff] %v335
        $region52: #{tpu_custom_call.1} parent=35 // pred_fallthru
          _
        // Predicated region
        $region53: #{tpu_custom_call.1} parent=35 // pred_check
          %p339 = pneg %p135
        $region54: #{tpu_custom_call.1} parent=35 // pred_check_branch
          %341 = sbr.rel (%p339) target = $region56
        $region55: #{tpu_custom_call.1} parent=35 // pred_region
          %343 = vsyncadd [#allocation5], 0
          %s344 = smul.addr %s21, 8
          %s345 = scalar_lea.hbm %s4, %s344
          %s347 = sshll.u32 [#allocation4], 4
          %s348 = int_to_ptr.vmem [resolvable:$true] %s347
          %s349 = sshll.u32 %s345, 4
          %s350 = int_to_ptr.hbm [resolvable:$true] %s349
          %352 = dma.vmem_to_hbm [thread:$0]  %s348, 128, %s350, [#allocation5]
        $region56: #{tpu_custom_call.1} parent=35 // pred_fallthru
          _
        // Predicated region
        $region57: #{tpu_custom_call.1} parent=35 // pred_check
          %p353 = pneg %p135
        $region58: #{tpu_custom_call.1} parent=35 // pred_check_branch
          %355 = sbr.rel (%p353) target = $region60
        $region59: #{tpu_custom_call.1} parent=35 // pred_region
          %357 = dma.done [#allocation5], 128
        $region60: #{tpu_custom_call.1} parent=35 // pred_fallthru
          _
      $region36: #{tpu_custom_call.1} parent=5 // pred_fallthru
        _
      %p358 = scmp.le.s32.totalorder 2, %s11
      // Predicated region
      $region61: #{tpu_custom_call.1} parent=5 // pred_check
        %p359 = pneg %p358
      $region62: #{tpu_custom_call.1} parent=5 // pred_check_branch
        %361 = sbr.rel (%p359) target = $region64
      $region63: #{tpu_custom_call.1} parent=5 // pred_region
        %s362 = ssub.s32 %s11, 2
      $region64: #{tpu_custom_call.1} parent=5 // pred_fallthru
        _
    $region6: #{tpu_custom_call.1} parent=1 // loop_footer
      %s15 = sadd.s32 1, %s11
    $region7: #{tpu_custom_call.1} parent=1 // loop_footer_branch
      %10 = sbr.rel target = $region3
    $region8: #{tpu_custom_call.1} parent=1 // loop_exit
      _
    %363 = vsyncpa [#allocation5], 1
    %s364 = scalar_lea.sflag [#allocation5], 1
    %365 = vsyncpa %s364, 1

</llo_original>
